<compile_context>
chip_gen: v7x
topology: tpu7x:2x2x1
jax: 0.10.0
libtpu: 0.0.40
codegen_flags: <defaults>
</compile_context>

<pallas_src>
import jax
import jax.numpy as jnp
from jax.experimental import pallas as pl
from jax.experimental.pallas import tpu as pltpu

# ----- hyper-params (the torch script's `params` dict) -----
PARAMS = dict(block_size=8, n_emb=32, n_heads=8, dropout=0.0)
BLOCK_SIZE = PARAMS["block_size"]
N_EMB = PARAMS["n_emb"]
N_HEADS = PARAMS["n_heads"]
HEAD_SIZE = N_EMB // N_HEADS
HS_HALF = HEAD_SIZE // 2
NUM_MODULE_HEADS = 1       # MultiHeadAttention(num_heads=1, head_size=HEAD_SIZE)
ROPE_BASE = 10000.0

_HIGH = jax.lax.Precision.HIGHEST   # used only at init / by the plain-JAX reference


# ---------------------------- Pallas kernel ----------------------------

def _mha_fused_kernel(x_ref, wf_ref, tbl_ref, o_ref):
    """Fused AttentionHead + output projection for one batch element (B == 1).

    x_ref   : (T, C)        input slab
    wf_ref  : (C, 3*C)      pre-packed [Wq_even | Wq_odd | Wk_even | Wk_odd | Wv@Wp];
                            q/k columns re-ordered to (RoPE pair p major, head i
                            minor); softmax scale folded into the Wq groups;
                            the output projection folded into the V group.
    tbl_ref : (T+nh+1, C)   rows 0:T      -> [cos | sin] RoPE tables (packed in
                                             the same (p, i) column order)
                            rows T:T+nh   -> additive causal mask {0,-1e30} in
                                             columns 0:nh
                            row  T+nh     -> projection bias bp (1, C)
    o_ref   : (T*nh, C)     o[t*nh+i, :] = softmax(wei)[t,i] @ (x @ Wv @ Wp) + bp
    """
    T, C = x_ref.shape
    nh = N_HEADS
    C2 = C // 2

    # --- all five projections (q even/odd, k even/odd, v') in ONE MXU pass ---
    z = jnp.dot(x_ref[...], wf_ref[...], preferred_element_type=jnp.float32)  # (T, 3C)
    qe, qo = z[:, 0:C2], z[:, C2:2 * C2]          # scale C**-0.5 already folded in
    ke, ko = z[:, 2 * C2:3 * C2], z[:, 3 * C2:4 * C2]
    v = z[:, 4 * C2:4 * C2 + C]                   # (T, C) == x @ (Wv @ Wp)

    # --- packed constant tables (single operand, aligned sublane offsets) ---
    cos = tbl_ref[0:T, 0:C2]                      # (T, C//2)
    sin = tbl_ref[0:T, C2:C]                      # (T, C//2)
    amask = tbl_ref[T:T + nh, 0:nh]               # (nh, nh) additive causal mask
    bp = tbl_ref[T + nh:T + nh + 1, :]            # (1, C) projection bias

    # --- RoPE rotation of the (even, odd) pairs — pure VPU f32 elementwise ---
    qe_r = qe * cos - qo * sin
    qo_r = qo * cos + qe * sin
    ke_r = ke * cos - ko * sin
    ko_r = ko * cos + ke * sin

    # --- scores: wei[t, i, j] = sum_d q_rot[t, i, d] * k_rot[t, j, d] ---
    # head_size is tiny (4): the per-t contraction is hs broadcast outer
    # products on the VPU (no batched dot_generals, no lane-width-2 reshapes).
    wei = jnp.zeros((T, nh, nh), dtype=jnp.float32)
    for p in range(HS_HALF):                      # static, unrolled (HS_HALF = 2)
        lo, hi = p * nh, (p + 1) * nh
        wei = wei + qe_r[:, lo:hi][:, :, None] * ke_r[:, lo:hi][:, None, :]
        wei = wei + qo_r[:, lo:hi][:, :, None] * ko_r[:, lo:hi][:, None, :]

    # Precomputed additive causal mask broadcast over the trailing (nh, nh)
    # dims (requires nh == T, exactly like the torch masked_fill broadcast).
    wei = wei + amask[None, :, :]

    # Softmax over the last dim (masked entries underflow to exactly 0);
    # reciprocal runs on the EUP slot (free relative to the VPU work).
    wei = wei - jnp.max(wei, axis=-1, keepdims=True)
    prob = jnp.exp(wei)
    prob = prob * pl.reciprocal(jnp.sum(prob, axis=-1, keepdims=True), approx=True)
    # TODO(synk): attention / output dropout modeled as identity (eval, p = 0).

    # out[t, i, c] = sum_j prob[t, i, j] * v'[j, c]   (torch `wei @ v` with the
    # output projection already folded into v'; B == 1), plus bias.
    o_ref[...] = (jnp.dot(prob.reshape(T * nh, nh), v,
                          preferred_element_type=jnp.float32) + bp)


# ---------------------------- wrapper ----------------------------

_VMEM = pl.BlockSpec(memory_space=pltpu.MemorySpace.VMEM)


def multi_head_attention(x, params):
    """Pallas forward.  x: (B, T, C) with B == 1, T == n_heads == block_size,
    C == n_emb.  Returns (B, T, n_heads, n_emb) — the torch module's shape."""
    B, T, C = x.shape
    assert B == 1, "torch `wei @ v` broadcasting is only valid here for B == 1"
    assert T == N_HEADS, "torch mask broadcasting requires T == n_heads"
    assert T == BLOCK_SIZE and C == N_EMB

    out2d = pl.pallas_call(
        _mha_fused_kernel,
        out_shape=jax.ShapeDtypeStruct((T * N_HEADS, C), jnp.float32),
        in_specs=[_VMEM] * 3,
        out_specs=_VMEM,
        # Single ungridded call: the whole problem (< 30 KiB) lives in VMEM.
        # NOTE(perf): if scaled to B > 1 / more module heads, add a leading
        # grid axis with dimension_semantics=("parallel", ...) so the second
        # v7x TensorCore is used; when T grows and BlockSpec tiling is added,
        # size tiles against 64 MiB physical VMEM on v7x (vs 128 MiB on
        # v5e/v6e) and set vmem_limit_bytes explicitly per generation.
    )(x[0], params["w_fused"], params["tables"])

    # final dropout(p=0) is identity; reshape is free at the XLA level.
    return out2d.reshape(B, T, N_HEADS, N_EMB)


# ---------------------------- params & reference ----------------------------

def _split_rope_weight(w):
    """Split a (C, C) q/k weight, stored as (in, out), into its RoPE even/odd
    pair members with output columns re-ordered to (pair p major, head i minor)
    so they line up with the packed cos/sin tables."""
    w4 = w.reshape(N_EMB, N_HEADS, HS_HALF, 2)            # (in, head i, pair p, member m)
    we = jnp.transpose(w4[..., 0], (0, 2, 1)).reshape(N_EMB, N_HEADS * HS_HALF)
    wo = jnp.transpose(w4[..., 1], (0, 2, 1)).reshape(N_EMB, N_HEADS * HS_HALF)
    return we, wo


def init_params(key):
    def linear_weight(k, fan_in, fan_out):
        # nn.Linear-style init, stored transposed as (in, out) so that y = x @ W.
        bound = 1.0 / (fan_in ** 0.5)
        return jax.random.uniform(k, (fan_in, fan_out), jnp.float32, -bound, bound)

    keys = jax.random.split(key, 5)
    wk = linear_weight(keys[0], N_EMB, N_EMB)
    wq = linear_weight(keys[1], N_EMB, N_EMB)
    wv = linear_weight(keys[2], N_EMB, N_EMB)
    wp = linear_weight(keys[3], N_EMB, N_EMB)
    bound = 1.0 / (N_EMB ** 0.5)
    bp = jax.random.uniform(keys[4], (1, N_EMB), jnp.float32, -bound, bound)

    # RoPE cache — matches RotaryPositionEmbeddings.rope_init/build_rope_cache:
    # theta built from the FULL n_emb dim, truncated to head_size//2 freqs.
    theta = ROPE_BASE ** (-2.0 * jnp.arange(N_EMB // 2, dtype=jnp.float32) / N_EMB)
    seq_idx = jnp.arange(BLOCK_SIZE, dtype=jnp.float32)
    idx_theta = (seq_idx[:, None] * theta[None, :])[:, :HS_HALF]     # (block, hs//2)
    cos, sin = jnp.cos(idx_theta), jnp.sin(idx_theta)

    # ---- pre-packed kernel operands (no per-call slicing / tiling under jit) ----
    # Softmax scale folded into Wq (RoPE is linear); output projection Wp
    # folded into Wv:  prob @ (x@Wv) @ Wp == prob @ (x @ (Wv@Wp)).
    scale = jnp.float32(N_EMB ** -0.5)
    wq_e, wq_o = _split_rope_weight(wq * scale)
    wk_e, wk_o = _split_rope_weight(wk)
    wv_p = jnp.dot(wv, wp, precision=_HIGH)                           # (C, C)
    w_fused = jnp.concatenate([wq_e, wq_o, wk_e, wk_o, wv_p], axis=1)  # (C, 3C)

    cos_packed = jnp.repeat(cos, N_HEADS, axis=1)                     # (block, C//2)
    sin_packed = jnp.repeat(sin, N_HEADS, axis=1)

    # Additive causal mask {0, -1e30}, broadcast over the trailing (nh, nh).
    row = jnp.arange(N_HEADS)[:, None]
    col = jnp.arange(N_HEADS)[None, :]
    add_mask = jnp.where(col <= row, 0.0, -1e30).astype(jnp.float32)  # (nh, nh)

    # Single constant-tables slab: rows 0:T = [cos|sin], rows T:T+nh = mask,
    # row T+nh = bias.  All sublane offsets are 8-aligned.
    tables = jnp.zeros((BLOCK_SIZE + N_HEADS + 1, N_EMB), jnp.float32)
    tables = tables.at[:BLOCK_SIZE, :N_EMB // 2].set(cos_packed)
    tables = tables.at[:BLOCK_SIZE, N_EMB // 2:].set(sin_packed)
    tables = tables.at[BLOCK_SIZE:BLOCK_SIZE + N_HEADS, :N_HEADS].set(add_mask)
    tables = tables.at[BLOCK_SIZE + N_HEADS, :].set(bp[0])

    return dict(heads=[dict(wq=wq, wk=wk, wv=wv)], wp=wp, bp=bp,
                cos=cos, sin=sin,
                w_fused=w_fused, tables=tables)


def reference_forward(x, params):
    """Plain-JAX transliteration of the torch forward (for correctness check)."""
    B, T, C = x.shape
    nh = N_HEADS
    hs = C // nh
    cos = params["cos"][:T]
    sin = params["sin"][:T]

    def rope(z):  # z: (B, T, nh, hs)
        z2 = z.reshape(B, T, nh, hs // 2, 2)
        c = cos[None, :, None, :]
        s = sin[None, :, None, :]
        r0 = z2[..., 0] * c - z2[..., 1] * s
        r1 = z2[..., 1] * c + z2[..., 0] * s
        return jnp.stack([r0, r1], axis=-1).reshape(B, T, nh, hs)

    outs = []
    for hp in params["heads"]:
        k = jnp.einsum("btc,cd->btd", x, hp["wk"], precision=_HIGH)
        q = jnp.einsum("btc,cd->btd", x, hp["wq"], precision=_HIGH)
        v = jnp.einsum("btc,cd->btd", x, hp["wv"], precision=_HIGH)
        k = rope(k.reshape(B, T, nh, hs))
        q = rope(q.reshape(B, T, nh, hs))
        wei = jnp.einsum("btid,btjd->btij", q, k, precision=_HIGH) * (C ** -0.5)
        mask = jnp.tril(jnp.ones((T, T), dtype=bool))
        wei = jnp.where(mask[None, None, :, :], wei, -jnp.inf)
        wei = jax.nn.softmax(wei, axis=-1)
        out = jnp.einsum("btij,bjc->btic", wei, v, precision=_HIGH)  # B == 1
        outs.append(out)
    out = jnp.concatenate(outs, axis=-1)
    out = jnp.einsum("btic,cd->btid", out, params["wp"], precision=_HIGH)
    return out + params["bp"][0]


if __name__ == "__main__":
    key = jax.random.PRNGKey(0)
    pkey, xkey = jax.random.split(key)
    params = init_params(pkey)

    B, T = 1, BLOCK_SIZE
    x = jax.random.normal(xkey, (B, T, N_EMB), jnp.float32)

    out = jax.jit(multi_head_attention)(x, params)
    out = jax.block_until_ready(out)

    ref = reference_forward(x, params)
    assert out.shape == (B, T, N_HEADS, N_EMB), out.shape
    max_err = float(jnp.max(jnp.abs(out - ref)))
    # DEFAULT precision (native bf16-pass MXU, f32 accumulation) + approx
    # reciprocal vs an f32 HIGHEST-precision reference -> O(1e-3) noise here.
    assert max_err < 2e-2, f"mismatch vs reference: max abs err {max_err}"
    print("KERNEL_OK")
</pallas_src>

<mosaic_0001>
module attributes {stable_mosaic.version = 11 : i64} {
  func.func @_mha_fused_kernel(%arg0: memref<8x32xf32, #tpu.memory_space<vmem>>, %arg1: memref<32x96xf32, #tpu.memory_space<vmem>>, %arg2: memref<17x32xf32, #tpu.memory_space<vmem>>, %arg3: memref<64x32xf32, #tpu.memory_space<vmem>>) attributes {dimension_semantics = [], scalar_prefetch = 0 : i64, scratch_operands = 0 : i64, tpu.core_type = #tpu.core_type<tc>} {
    %c0 = arith.constant 0 : index
    %c0_0 = arith.constant 0 : index
    %0 = vector.load %arg0[%c0, %c0_0] : memref<8x32xf32, #tpu.memory_space<vmem>>, vector<8x32xf32>
    %c0_1 = arith.constant 0 : index
    %c0_2 = arith.constant 0 : index
    %1 = vector.load %arg1[%c0_1, %c0_2] : memref<32x96xf32, #tpu.memory_space<vmem>>, vector<32x96xf32>
    %cst = arith.constant dense<0.000000e+00> : vector<8x96xf32>
    %2 = tpu.matmul %0, %1, %cst {dimension_numbers = #tpu.dot_dimension_numbers<[1], [0], [0], [1], [0, 0, 1, 1], [], []>} : vector<8x32xf32>, vector<32x96xf32>, vector<8x96xf32> -> vector<8x96xf32>
    %3 = vector.extract_strided_slice %2 {offsets = [0, 0], sizes = [8, 16], strides = [1, 1]} : vector<8x96xf32> to vector<8x16xf32>
    %4 = vector.extract_strided_slice %2 {offsets = [0, 16], sizes = [8, 16], strides = [1, 1]} : vector<8x96xf32> to vector<8x16xf32>
    %5 = vector.extract_strided_slice %2 {offsets = [0, 32], sizes = [8, 16], strides = [1, 1]} : vector<8x96xf32> to vector<8x16xf32>
    %6 = vector.extract_strided_slice %2 {offsets = [0, 48], sizes = [8, 16], strides = [1, 1]} : vector<8x96xf32> to vector<8x16xf32>
    %7 = vector.extract_strided_slice %2 {offsets = [0, 64], sizes = [8, 32], strides = [1, 1]} : vector<8x96xf32> to vector<8x32xf32>
    %c0_3 = arith.constant 0 : index
    %c0_4 = arith.constant 0 : index
    %8 = vector.load %arg2[%c0_3, %c0_4] : memref<17x32xf32, #tpu.memory_space<vmem>>, vector<8x16xf32>
    %c0_5 = arith.constant 0 : index
    %c16 = arith.constant 16 : index
    %9 = vector.load %arg2[%c0_5, %c16] : memref<17x32xf32, #tpu.memory_space<vmem>>, vector<8x16xf32>
    %c8 = arith.constant 8 : index
    %c0_6 = arith.constant 0 : index
    %10 = vector.load %arg2[%c8, %c0_6] : memref<17x32xf32, #tpu.memory_space<vmem>>, vector<8x8xf32>
    %c16_7 = arith.constant 16 : index
    %c0_8 = arith.constant 0 : index
    %11 = vector.load %arg2[%c16_7, %c0_8] : memref<17x32xf32, #tpu.memory_space<vmem>>, vector<1x32xf32>
    %12 = arith.mulf %3, %8 : vector<8x16xf32>
    %13 = arith.mulf %4, %9 : vector<8x16xf32>
    %14 = arith.subf %12, %13 : vector<8x16xf32>
    %15 = arith.mulf %4, %8 : vector<8x16xf32>
    %16 = arith.mulf %3, %9 : vector<8x16xf32>
    %17 = arith.addf %15, %16 : vector<8x16xf32>
    %18 = arith.mulf %5, %8 : vector<8x16xf32>
    %19 = arith.mulf %6, %9 : vector<8x16xf32>
    %20 = arith.subf %18, %19 : vector<8x16xf32>
    %21 = arith.mulf %6, %8 : vector<8x16xf32>
    %22 = arith.mulf %5, %9 : vector<8x16xf32>
    %23 = arith.addf %21, %22 : vector<8x16xf32>
    %cst_9 = arith.constant 0.000000e+00 : f32
    %24 = vector.broadcast %cst_9 : f32 to vector<8x8x8xf32>
    %25 = vector.extract_strided_slice %14 {offsets = [0, 0], sizes = [8, 8], strides = [1, 1]} : vector<8x16xf32> to vector<8x8xf32>
    %26 = vector.shape_cast %25 : vector<8x8xf32> to vector<8x8x1xf32>
    %27 = vector.extract_strided_slice %20 {offsets = [0, 0], sizes = [8, 8], strides = [1, 1]} : vector<8x16xf32> to vector<8x8xf32>
    %28 = vector.shape_cast %27 : vector<8x8xf32> to vector<8x1x8xf32>
    %29 = vector.broadcast %26 : vector<8x8x1xf32> to vector<8x8x8xf32>
    %30 = vector.broadcast %28 : vector<8x1x8xf32> to vector<8x8x8xf32>
    %31 = arith.mulf %29, %30 : vector<8x8x8xf32>
    %32 = arith.addf %24, %31 : vector<8x8x8xf32>
    %33 = vector.extract_strided_slice %17 {offsets = [0, 0], sizes = [8, 8], strides = [1, 1]} : vector<8x16xf32> to vector<8x8xf32>
    %34 = vector.shape_cast %33 : vector<8x8xf32> to vector<8x8x1xf32>
    %35 = vector.extract_strided_slice %23 {offsets = [0, 0], sizes = [8, 8], strides = [1, 1]} : vector<8x16xf32> to vector<8x8xf32>
    %36 = vector.shape_cast %35 : vector<8x8xf32> to vector<8x1x8xf32>
    %37 = vector.broadcast %34 : vector<8x8x1xf32> to vector<8x8x8xf32>
    %38 = vector.broadcast %36 : vector<8x1x8xf32> to vector<8x8x8xf32>
    %39 = arith.mulf %37, %38 : vector<8x8x8xf32>
    %40 = arith.addf %32, %39 : vector<8x8x8xf32>
    %41 = vector.extract_strided_slice %14 {offsets = [0, 8], sizes = [8, 8], strides = [1, 1]} : vector<8x16xf32> to vector<8x8xf32>
    %42 = vector.shape_cast %41 : vector<8x8xf32> to vector<8x8x1xf32>
    %43 = vector.extract_strided_slice %20 {offsets = [0, 8], sizes = [8, 8], strides = [1, 1]} : vector<8x16xf32> to vector<8x8xf32>
    %44 = vector.shape_cast %43 : vector<8x8xf32> to vector<8x1x8xf32>
    %45 = vector.broadcast %42 : vector<8x8x1xf32> to vector<8x8x8xf32>
    %46 = vector.broadcast %44 : vector<8x1x8xf32> to vector<8x8x8xf32>
    %47 = arith.mulf %45, %46 : vector<8x8x8xf32>
    %48 = arith.addf %40, %47 : vector<8x8x8xf32>
    %49 = vector.extract_strided_slice %17 {offsets = [0, 8], sizes = [8, 8], strides = [1, 1]} : vector<8x16xf32> to vector<8x8xf32>
    %50 = vector.shape_cast %49 : vector<8x8xf32> to vector<8x8x1xf32>
    %51 = vector.extract_strided_slice %23 {offsets = [0, 8], sizes = [8, 8], strides = [1, 1]} : vector<8x16xf32> to vector<8x8xf32>
    %52 = vector.shape_cast %51 : vector<8x8xf32> to vector<8x1x8xf32>
    %53 = vector.broadcast %50 : vector<8x8x1xf32> to vector<8x8x8xf32>
    %54 = vector.broadcast %52 : vector<8x1x8xf32> to vector<8x8x8xf32>
    %55 = arith.mulf %53, %54 : vector<8x8x8xf32>
    %56 = arith.addf %48, %55 : vector<8x8x8xf32>
    %57 = vector.shape_cast %10 : vector<8x8xf32> to vector<1x8x8xf32>
    %58 = vector.broadcast %57 : vector<1x8x8xf32> to vector<8x8x8xf32>
    %59 = arith.addf %56, %58 : vector<8x8x8xf32>
    %cst_10 = arith.constant dense<0xFF800000> : vector<8x8xf32>
    %60 = vector.multi_reduction <maximumf>, %59, %cst_10 [2] : vector<8x8x8xf32> to vector<8x8xf32>
    %61 = vector.shape_cast %60 : vector<8x8xf32> to vector<8x8x1xf32>
    %62 = vector.broadcast %61 : vector<8x8x1xf32> to vector<8x8x8xf32>
    %63 = arith.subf %59, %62 : vector<8x8x8xf32>
    %64 = math.exp %63 : vector<8x8x8xf32>
    %cst_11 = arith.constant dense<0.000000e+00> : vector<8x8xf32>
    %65 = vector.multi_reduction <add>, %64, %cst_11 [2] : vector<8x8x8xf32> to vector<8x8xf32>
    %66 = vector.shape_cast %65 : vector<8x8xf32> to vector<8x8x1xf32>
    %67 = tpu.reciprocal %66 {approx = true} : vector<8x8x1xf32> -> vector<8x8x1xf32>
    %68 = vector.broadcast %67 : vector<8x8x1xf32> to vector<8x8x8xf32>
    %69 = arith.mulf %64, %68 : vector<8x8x8xf32>
    %70 = vector.shape_cast %69 : vector<8x8x8xf32> to vector<64x8xf32>
    %cst_12 = arith.constant dense<0.000000e+00> : vector<64x32xf32>
    %71 = tpu.matmul %70, %7, %cst_12 {dimension_numbers = #tpu.dot_dimension_numbers<[1], [0], [0], [1], [0, 0, 1, 1], [], []>} : vector<64x8xf32>, vector<8x32xf32>, vector<64x32xf32> -> vector<64x32xf32>
    %72 = vector.broadcast %11 : vector<1x32xf32> to vector<64x32xf32>
    %73 = arith.addf %71, %72 : vector<64x32xf32>
    %c0_13 = arith.constant 0 : index
    %c0_14 = arith.constant 0 : index
    %74 = vector.load %arg3[%c0_13, %c0_14] : memref<64x32xf32, #tpu.memory_space<vmem>>, vector<64x32xf32>
    tpu.vector_store %arg3[%c0_13, %c0_14], %73 {strides = array<i32>} : memref<64x32xf32, #tpu.memory_space<vmem>>, vector<64x32xf32>,
    return
  }
}

</mosaic_0001>

<llo_original>
// kernel: multi_head_attention.1
$region0: #{multi_head_attention.1}
  #allocation0 [shape = 'u32[]', space=smem, size = 0x4, offset = 0x4, fixed_abs, tag = 'smem constant byte address 0x4 - core index']
  #allocation1 [shape = 'u32[144,128]{1,0:T(1,128)}', space=vmem, size = 0x12000, scoped, tag = 'internal scratch']
  %s0 = inlined_call_operand.hbm [shape: f32[8,32], index: 0, kind: input, shape index: {}]
  %s1 = inlined_call_operand.hbm [shape: f32[32,96], index: 1, kind: input, shape index: {}]
  %s2 = inlined_call_operand.hbm [shape: f32[17,32], index: 2, kind: input, shape index: {}]
  %s3 = inlined_call_operand.hbm [shape: f32[64,32], index: 3, kind: output, shape index: {}]
  %s4 = sld [smem:[#allocation0]]
  $region34: #{multi_head_attention.1} parent=0
    _
  %s6 = ssub.s32 1, %s4
  %s7 = scalar_select 0, %s6, %s4
  $region1: #{multi_head_attention.1} parent=0
    #allocation2 [shape = 'u8[4096]{0}', space=vmem, size = 0x1000, scoped, tag = 'input window, operand 0, single buffered']
    #allocation3 [shape = 's32[1]{0}', space=sflag, size = 0x4, scoped, tag = 'scoped memory for multi_head_attention.1']
    #allocation4 [shape = 's32[1]{0}', space=sflag, size = 0x4, scoped, tag = 'scoped memory for multi_head_attention.1']
    #allocation5 [shape = 'u8[16384]{0}', space=vmem, size = 0x4000, scoped, tag = 'input window, operand 1, single buffered']
    #allocation6 [shape = 's32[1]{0}', space=sflag, size = 0x4, scoped, tag = 'scoped memory for multi_head_attention.1']
    #allocation7 [shape = 'u8[12288]{0}', space=vmem, size = 0x3000, scoped, tag = 'input window, operand 2, single buffered']
    #allocation8 [shape = 'u8[32768]{0}', space=vmem, size = 0x8000, scoped, tag = 'output window, operand 0, single buffered']
    %8 = vsyncpa [#allocation3], 0
    %9 = vsyncpa [#allocation6], 0
    %10 = vsyncpa [#allocation4], 0
    // Predicated region
    $region2: #{multi_head_attention.1} parent=1 // pred_check
      _
    $region3: #{multi_head_attention.1} parent=1 // pred_check_branch
      %12 = sbr.rel (0) target = $region5
    $region4: #{multi_head_attention.1} parent=1 // pred_region
      %s14 = ssub.s32 128, 128
      %15 = vsyncadd [#allocation3], %s14
      %s17 = sshll.u32 [#allocation2], 4
      %s18 = int_to_ptr.vmem [resolvable:$true] %s17
      %20 = dma.hbm_to_vmem [thread:$0]  %s0, 128, %s18, [#allocation3]
    $region5: #{multi_head_attention.1} parent=1 // pred_fallthru
      _
    // Predicated region
    $region6: #{multi_head_attention.1} parent=1 // pred_check
      _
    $region7: #{multi_head_attention.1} parent=1 // pred_check_branch
      %22 = sbr.rel (0) target = $region9
    $region8: #{multi_head_attention.1} parent=1 // pred_region
      %s24 = ssub.s32 512, 512
      %25 = vsyncadd [#allocation6], %s24
      %s26 = sshll.u32 [#allocation5], 4
      %s27 = int_to_ptr.vmem [resolvable:$true] %s26
      %32 = dma.hbm_to_vmem [thread:$0]  %s1, 512, %s27, [#allocation6], 128, 128, 8
    $region9: #{multi_head_attention.1} parent=1 // pred_fallthru
      _
    // Predicated region
    $region10: #{multi_head_attention.1} parent=1 // pred_check
      _
    $region11: #{multi_head_attention.1} parent=1 // pred_check_branch
      %34 = sbr.rel (0) target = $region13
    $region12: #{multi_head_attention.1} parent=1 // pred_region
      %s36 = ssub.s32 384, 384
      %37 = vsyncadd [#allocation6], %s36
      %s38 = sshll.u32 [#allocation7], 4
      %s39 = int_to_ptr.vmem [resolvable:$true] %s38
      %44 = dma.hbm_to_vmem [thread:$0]  %s2, 384, %s39, [#allocation6], 128, 128, 8
    $region13: #{multi_head_attention.1} parent=1 // pred_fallthru
      _
    // Predicated region
    $region14: #{multi_head_attention.1} parent=1 // pred_check
      _
    $region15: #{multi_head_attention.1} parent=1 // pred_check_branch
      %46 = sbr.rel (0) target = $region17
    $region16: #{multi_head_attention.1} parent=1 // pred_region
      %47 = dma.done [#allocation3], 128
    $region17: #{multi_head_attention.1} parent=1 // pred_fallthru
      _
    // Predicated region
    $region18: #{multi_head_attention.1} parent=1 // pred_check
      _
    $region19: #{multi_head_attention.1} parent=1 // pred_check_branch
      %49 = sbr.rel (0) target = $region21
    $region20: #{multi_head_attention.1} parent=1 // pred_region
      %50 = dma.done [#allocation6], 512
    $region21: #{multi_head_attention.1} parent=1 // pred_fallthru
      _
    // Predicated region
    $region22: #{multi_head_attention.1} parent=1 // pred_check
      _
    $region23: #{multi_head_attention.1} parent=1 // pred_check_branch
      %52 = sbr.rel (0) target = $region25
    $region24: #{multi_head_attention.1} parent=1 // pred_region
      %53 = dma.done [#allocation6], 384
    $region25: #{multi_head_attention.1} parent=1 // pred_fallthru
      _
    %v54 = vld [vmem:[#allocation2] sm:$0xff]
    %v55 = vld [vmem:[#allocation5] sm:$0xff]
    %v56 = vld [vmem:[#allocation5 + $0x8] sm:$0xff]
    %v57 = vld [vmem:[#allocation5 + $0x10] sm:$0xff]
    %v58 = vld [vmem:[#allocation5 + $0x18] sm:$0xff]
    %vm59 = vcmask 261120
    %v61 = vsel %vm59, %v54, 0
    %63 = vmatprep.subr.mxu0 0.0
    %64 = vmatpush1.msra.mxu0 %v55
    %65 = vmatprep.subr.mxu0 0.0
    %66 = vmatpush1.msra.mxu0 %v56
    %67 = vmatprep.subr.mxu0 0.0
    %68 = vmatpush1.msra.mxu0 %v57
    %69 = vmatprep.subr.mxu0 0.0
    %70 = vmatpush1.msra.mxu0 %v58
    %71 = vmatprep.subr.mxu0 0.0
    %72 = vmatpush1.msra.mxu0 0.0
    %73 = vmatprep.subr.mxu0 0.0
    %74 = vmatpush1.msra.mxu0 0.0
    %75 = vmatprep.subr.mxu0 0.0
    %76 = vmatpush1.msra.mxu0 0.0
    %77 = vmatprep.subr.mxu0 0.0
    %78 = vmatpush1.msra.mxu0 0.0
    %79 = vmatprep.subr.mxu0 0.0
    %80 = vmatpush1.msra.mxu0 0.0
    %81 = vmatprep.subr.mxu0 0.0
    %82 = vmatpush1.msra.mxu0 0.0
    %83 = vmatprep.subr.mxu0 0.0
    %84 = vmatpush1.msra.mxu0 0.0
    %85 = vmatprep.subr.mxu0 0.0
    %86 = vmatpush1.msra.mxu0 0.0
    %87 = vmatprep.subr.mxu0 0.0
    %88 = vmatpush1.msra.mxu0 0.0
    %89 = vmatprep.subr.mxu0 0.0
    %90 = vmatpush1.msra.mxu0 0.0
    %91 = vmatprep.subr.mxu0 0.0
    %92 = vmatpush1.msra.mxu0 0.0
    %93 = vmatprep.subr.mxu0 0.0
    %94 = vmatpush1.msra.mxu0 0.0
    %95 = vmatprep.subr.mxu0 0.0
    %96 = vmatpush1.msra.mxu0 0.0
    %97 = vmatprep.subr.mxu0 0.0
    %98 = vmatpush1.msra.mxu0 0.0
    %99 = vmatprep.subr.mxu0 0.0
    %100 = vmatpush1.msra.mxu0 0.0
    %101 = vmatprep.subr.mxu0 0.0
    %102 = vmatpush1.msra.mxu0 0.0
    %103 = vmatprep.subr.mxu0 0.0
    %104 = vmatpush1.msra.mxu0 0.0
    %105 = vmatprep.subr.mxu0 0.0
    %106 = vmatpush1.msra.mxu0 0.0
    %107 = vmatprep.subr.mxu0 0.0
    %108 = vmatpush1.msra.mxu0 0.0
    %109 = vmatprep.subr.mxu0 0.0
    %110 = vmatpush1.msra.mxu0 0.0
    %111 = vmatprep.subr.mxu0 0.0
    %112 = vmatpush1.msra.mxu0 0.0
    %113 = vmatprep.subr.mxu0 0.0
    %114 = vmatpush1.msra.mxu0 0.0
    %115 = vmatprep.subr.mxu0 0.0
    %116 = vmatpush1.msra.mxu0 0.0
    %117 = vmatprep.subr.mxu0 0.0
    %118 = vmatpush1.msra.mxu0 0.0
    %119 = vmatprep.subr.mxu0 0.0
    %120 = vmatpush1.msra.mxu0 0.0
    %121 = vmatprep.subr.mxu0 0.0
    %122 = vmatpush1.msra.mxu0 0.0
    %123 = vmatprep.subr.mxu0 0.0
    %124 = vmatpush1.msra.mxu0 0.0
    %125 = vmatprep.subr.mxu0 0.0
    %126 = vmatpush1.msra.mxu0 0.0
    %127 = vmatprep.mubr.f32.mxu0 0.0
    %128 = vmatmul.mubr.f32.gmra.mrb[0].mxu0 %v61
    %v129 = vpop.f32.mrb[0].mxu0
    %v130 = vadd.f32 0.0, %v129
    %v131 = vpop.f32.mrb[0].mxu0
    %132 = vdwg.mxu0
    %v133 = vld [vmem:[#allocation7] sm:$0xff]
    %v134 = vld [vmem:[#allocation7 + $0x8] sm:$0xff]
    %v135 = vld [vmem:[#allocation7 + $0x10] sm:$0x1]
    %v136 = vmul.f32 %v130, %v133
    %138 = vrot.lane.b32.xlu0 %v136, 112
    %v139 = vpop.permute.xlu0 %138
    %v141 = vsub.f32 %v136, %v139
    %143 = vrot.lane.b32.xlu0 %v133, 16
    %v144 = vpop.permute.xlu0 %143
    %v146 = vmul.f32 %v130, %v144
    %147 = vrot.lane.b32.xlu0 %v133, 112
    %v148 = vpop.permute.xlu0 %147
    %v150 = vmul.f32 %v130, %v148
    %152 = vrot.lane.b32.xlu0 %v150, 16
    %v153 = vpop.permute.xlu0 %152
    %v155 = vadd.f32 %v146, %v153
    %156 = vrot.lane.b32.xlu0 %v133, 32
    %v157 = vpop.permute.xlu0 %156
    %v159 = vmul.f32 %v130, %v157
    %161 = vrot.lane.b32.xlu0 %v159, 112
    %v162 = vpop.permute.xlu0 %161
    %v164 = vsub.f32 %v159, %v162
    %165 = vrot.lane.b32.xlu0 %v133, 48
    %v166 = vpop.permute.xlu0 %165
    %v168 = vmul.f32 %v130, %v166
    %170 = vrot.lane.b32.xlu0 %v146, 16
    %v171 = vpop.permute.xlu0 %170
    %v173 = vadd.f32 %v168, %v171
    %v174 = vlaneseq
    %v175 = vshrl.u32 %v174, 7
    %v176 = vsub.s32 0, %v175
    %v177 = vrot.slane %v141, %v176
    %179 = vbcast.lane.b32.xlu0 %v177, 256
    %v180 = vpop.permute.xlu0 %179
    %v181 = vlaneseq
    %v182 = vshrl.u32 %v181, 7
    %v183 = vsub.s32 1, %v182
    %v184 = vrot.slane %v141, %v183
    %186 = vbcast.lane.b32.xlu0 %v184, 256
    %v187 = vpop.permute.xlu0 %186
    %v188 = vlaneseq
    %v189 = vshrl.u32 %v188, 7
    %v190 = vsub.s32 2, %v189
    %v191 = vrot.slane %v141, %v190
    %193 = vbcast.lane.b32.xlu0 %v191, 256
    %v194 = vpop.permute.xlu0 %193
    %v195 = vlaneseq
    %v196 = vshrl.u32 %v195, 7
    %v197 = vsub.s32 3, %v196
    %v198 = vrot.slane %v141, %v197
    %200 = vbcast.lane.b32.xlu0 %v198, 256
    %v201 = vpop.permute.xlu0 %200
    %v202 = vlaneseq
    %v203 = vshrl.u32 %v202, 7
    %v204 = vsub.s32 4, %v203
    %v205 = vrot.slane %v141, %v204
    %207 = vbcast.lane.b32.xlu0 %v205, 256
    %v208 = vpop.permute.xlu0 %207
    %v209 = vlaneseq
    %v210 = vshrl.u32 %v209, 7
    %v211 = vsub.s32 5, %v210
    %v212 = vrot.slane %v141, %v211
    %214 = vbcast.lane.b32.xlu0 %v212, 256
    %v215 = vpop.permute.xlu0 %214
    %v216 = vlaneseq
    %v217 = vshrl.u32 %v216, 7
    %v218 = vsub.s32 6, %v217
    %v219 = vrot.slane %v141, %v218
    %221 = vbcast.lane.b32.xlu0 %v219, 256
    %v222 = vpop.permute.xlu0 %221
    %v223 = vlaneseq
    %v224 = vshrl.u32 %v223, 7
    %v225 = vsub.s32 7, %v224
    %v226 = vrot.slane %v141, %v225
    %228 = vbcast.lane.b32.xlu0 %v226, 256
    %v229 = vpop.permute.xlu0 %228
    %v231 = vcombine.high %v164, %v164
    %v233 = vunpack.c.l.s4 1966171168
    %v234 = vunpack.c.0.s8 %v233
    %v235 = vlaneseq
    %v236 = vshrl.u32 %v235, 7
    %v237 = vsub.s32 %v234, %v236
    %v238 = vrot.slane %v164, %v237
    %v240 = vunpack.c.l.s4 1966171168
    %v241 = vunpack.c.0.s8 %v240
    %v242 = vlaneseq
    %v243 = vshrl.u32 %v242, 7
    %v244 = vsub.s32 %v241, %v243
    %v245 = vrot.slane %v231, %v244
    %v246 = vcombine.high %v238, %v238
    %v247 = vcombine.high %v245, %v245
    %v249 = vunpack.c.l.s4 1966171168
    %v250 = vunpack.c.0.s8 %v249
    %v251 = vlaneseq
    %v252 = vshrl.u32 %v251, 7
    %v253 = vsub.s32 %v250, %v252
    %v254 = vrot.slane %v238, %v253
    %v256 = vunpack.c.l.s4 1966171168
    %v257 = vunpack.c.0.s8 %v256
    %v258 = vlaneseq
    %v259 = vshrl.u32 %v258, 7
    %v260 = vsub.s32 %v257, %v259
    %v261 = vrot.slane %v245, %v260
    %v263 = vunpack.c.l.s4 1966171168
    %v264 = vunpack.c.0.s8 %v263
    %v265 = vlaneseq
    %v266 = vshrl.u32 %v265, 7
    %v267 = vsub.s32 %v264, %v266
    %v268 = vrot.slane %v246, %v267
    %v270 = vunpack.c.l.s4 1966171168
    %v271 = vunpack.c.0.s8 %v270
    %v272 = vlaneseq
    %v273 = vshrl.u32 %v272, 7
    %v274 = vsub.s32 %v271, %v273
    %v275 = vrot.slane %v247, %v274
    %v276 = vcombine.high %v254, %v254
    %v277 = vcombine.high %v261, %v261
    %v278 = vcombine.high %v268, %v268
    %v279 = vcombine.high %v275, %v275
    %v280 = vlaneseq
    %v281 = vshrl.u32 %v280, 7
    %v282 = vsub.s32 0, %v281
    %v283 = vrot.slane %v254, %v282
    %v284 = vlaneseq
    %v285 = vshrl.u32 %v284, 7
    %v286 = vsub.s32 0, %v285
    %v287 = vrot.slane %v268, %v286
    %v288 = vlaneseq
    %v289 = vshrl.u32 %v288, 7
    %v290 = vsub.s32 0, %v289
    %v291 = vrot.slane %v276, %v290
    %v292 = vlaneseq
    %v293 = vshrl.u32 %v292, 7
    %v294 = vsub.s32 0, %v293
    %v295 = vrot.slane %v278, %v294
    %v296 = vlaneseq
    %v297 = vshrl.u32 %v296, 7
    %v298 = vsub.s32 0, %v297
    %v299 = vrot.slane %v261, %v298
    %v300 = vlaneseq
    %v301 = vshrl.u32 %v300, 7
    %v302 = vsub.s32 0, %v301
    %v303 = vrot.slane %v275, %v302
    %v304 = vlaneseq
    %v305 = vshrl.u32 %v304, 7
    %v306 = vsub.s32 0, %v305
    %v307 = vrot.slane %v277, %v306
    %v308 = vlaneseq
    %v309 = vshrl.u32 %v308, 7
    %v310 = vsub.s32 0, %v309
    %v311 = vrot.slane %v279, %v310
    %v320 = vmul.f32 %v180, %v283
    %v321 = vmul.f32 %v187, %v287
    %v322 = vmul.f32 %v194, %v291
    %v323 = vmul.f32 %v201, %v295
    %v324 = vmul.f32 %v208, %v299
    %v325 = vmul.f32 %v215, %v303
    %v326 = vmul.f32 %v222, %v307
    %v327 = vmul.f32 %v229, %v311
    %v328 = vadd.f32 %v320, 0.0
    %v329 = vadd.f32 %v321, 0.0
    %v330 = vadd.f32 %v322, 0.0
    %v331 = vadd.f32 %v323, 0.0
    %v332 = vadd.f32 %v324, 0.0
    %v333 = vadd.f32 %v325, 0.0
    %v334 = vadd.f32 %v326, 0.0
    %v335 = vadd.f32 %v327, 0.0
    %v336 = vlaneseq
    %v337 = vshrl.u32 %v336, 7
    %v338 = vsub.s32 0, %v337
    %v339 = vrot.slane %v155, %v338
    %s341 = sor.u32 256, 16
    %342 = vbcast.lane.b32.xlu0 %v339, %s341
    %v343 = vpop.permute.xlu0 %342
    %v344 = vlaneseq
    %v345 = vshrl.u32 %v344, 7
    %v346 = vsub.s32 1, %v345
    %v347 = vrot.slane %v155, %v346
    %s349 = sor.u32 256, 16
    %350 = vbcast.lane.b32.xlu0 %v347, %s349
    %v351 = vpop.permute.xlu0 %350
    %v352 = vlaneseq
    %v353 = vshrl.u32 %v352, 7
    %v354 = vsub.s32 2, %v353
    %v355 = vrot.slane %v155, %v354
    %s357 = sor.u32 256, 16
    %358 = vbcast.lane.b32.xlu0 %v355, %s357
    %v359 = vpop.permute.xlu0 %358
    %v360 = vlaneseq
    %v361 = vshrl.u32 %v360, 7
    %v362 = vsub.s32 3, %v361
    %v363 = vrot.slane %v155, %v362
    %s365 = sor.u32 256, 16
    %366 = vbcast.lane.b32.xlu0 %v363, %s365
    %v367 = vpop.permute.xlu0 %366
    %v368 = vlaneseq
    %v369 = vshrl.u32 %v368, 7
    %v370 = vsub.s32 4, %v369
    %v371 = vrot.slane %v155, %v370
    %s373 = sor.u32 256, 16
    %374 = vbcast.lane.b32.xlu0 %v371, %s373
    %v375 = vpop.permute.xlu0 %374
    %v376 = vlaneseq
    %v377 = vshrl.u32 %v376, 7
    %v378 = vsub.s32 5, %v377
    %v379 = vrot.slane %v155, %v378
    %s381 = sor.u32 256, 16
    %382 = vbcast.lane.b32.xlu0 %v379, %s381
    %v383 = vpop.permute.xlu0 %382
    %v384 = vlaneseq
    %v385 = vshrl.u32 %v384, 7
    %v386 = vsub.s32 6, %v385
    %v387 = vrot.slane %v155, %v386
    %s389 = sor.u32 256, 16
    %390 = vbcast.lane.b32.xlu0 %v387, %s389
    %v391 = vpop.permute.xlu0 %390
    %v392 = vlaneseq
    %v393 = vshrl.u32 %v392, 7
    %v394 = vsub.s32 7, %v393
    %v395 = vrot.slane %v155, %v394
    %s397 = sor.u32 256, 16
    %398 = vbcast.lane.b32.xlu0 %v395, %s397
    %v399 = vpop.permute.xlu0 %398
    %v401 = vcombine.high %v173, %v173
    %v403 = vunpack.c.l.s4 1966171168
    %v404 = vunpack.c.0.s8 %v403
    %v405 = vlaneseq
    %v406 = vshrl.u32 %v405, 7
    %v407 = vsub.s32 %v404, %v406
    %v408 = vrot.slane %v173, %v407
    %v410 = vunpack.c.l.s4 1966171168
    %v411 = vunpack.c.0.s8 %v410
    %v412 = vlaneseq
    %v413 = vshrl.u32 %v412, 7
    %v414 = vsub.s32 %v411, %v413
    %v415 = vrot.slane %v401, %v414
    %v416 = vcombine.high %v408, %v408
    %v417 = vcombine.high %v415, %v415
    %v419 = vunpack.c.l.s4 1966171168
    %v420 = vunpack.c.0.s8 %v419
    %v421 = vlaneseq
    %v422 = vshrl.u32 %v421, 7
    %v423 = vsub.s32 %v420, %v422
    %v424 = vrot.slane %v408, %v423
    %v426 = vunpack.c.l.s4 1966171168
    %v427 = vunpack.c.0.s8 %v426
    %v428 = vlaneseq
    %v429 = vshrl.u32 %v428, 7
    %v430 = vsub.s32 %v427, %v429
    %v431 = vrot.slane %v415, %v430
    %v433 = vunpack.c.l.s4 1966171168
    %v434 = vunpack.c.0.s8 %v433
    %v435 = vlaneseq
    %v436 = vshrl.u32 %v435, 7
    %v437 = vsub.s32 %v434, %v436
    %v438 = vrot.slane %v416, %v437
    %v440 = vunpack.c.l.s4 1966171168
    %v441 = vunpack.c.0.s8 %v440
    %v442 = vlaneseq
    %v443 = vshrl.u32 %v442, 7
    %v444 = vsub.s32 %v441, %v443
    %v445 = vrot.slane %v417, %v444
    %v446 = vcombine.high %v424, %v424
    %v447 = vcombine.high %v431, %v431
    %v448 = vcombine.high %v438, %v438
    %v449 = vcombine.high %v445, %v445
    %v450 = vlaneseq
    %v451 = vshrl.u32 %v450, 7
    %v452 = vsub.s32 0, %v451
    %v453 = vrot.slane %v424, %v452
    %v454 = vlaneseq
    %v455 = vshrl.u32 %v454, 7
    %v456 = vsub.s32 0, %v455
    %v457 = vrot.slane %v438, %v456
    %v458 = vlaneseq
    %v459 = vshrl.u32 %v458, 7
    %v460 = vsub.s32 0, %v459
    %v461 = vrot.slane %v446, %v460
    %v462 = vlaneseq
    %v463 = vshrl.u32 %v462, 7
    %v464 = vsub.s32 0, %v463
    %v465 = vrot.slane %v448, %v464
    %v466 = vlaneseq
    %v467 = vshrl.u32 %v466, 7
    %v468 = vsub.s32 0, %v467
    %v469 = vrot.slane %v431, %v468
    %v470 = vlaneseq
    %v471 = vshrl.u32 %v470, 7
    %v472 = vsub.s32 0, %v471
    %v473 = vrot.slane %v445, %v472
    %v474 = vlaneseq
    %v475 = vshrl.u32 %v474, 7
    %v476 = vsub.s32 0, %v475
    %v477 = vrot.slane %v447, %v476
    %v478 = vlaneseq
    %v479 = vshrl.u32 %v478, 7
    %v480 = vsub.s32 0, %v479
    %v481 = vrot.slane %v449, %v480
    %v490 = vmul.f32 %v343, %v453
    %v491 = vmul.f32 %v351, %v457
    %v492 = vmul.f32 %v359, %v461
    %v493 = vmul.f32 %v367, %v465
    %v494 = vmul.f32 %v375, %v469
    %v495 = vmul.f32 %v383, %v473
    %v496 = vmul.f32 %v391, %v477
    %v497 = vmul.f32 %v399, %v481
    %506 = vrot.lane.b32.xlu0 %v490, 112
    %v507 = vpop.permute.xlu0 %506
    %508 = vrot.lane.b32.xlu0 %v491, 112
    %v509 = vpop.permute.xlu0 %508
    %510 = vrot.lane.b32.xlu0 %v492, 112
    %v511 = vpop.permute.xlu0 %510
    %512 = vrot.lane.b32.xlu0 %v493, 112
    %v513 = vpop.permute.xlu0 %512
    %514 = vrot.lane.b32.xlu0 %v494, 112
    %v515 = vpop.permute.xlu0 %514
    %516 = vrot.lane.b32.xlu0 %v495, 112
    %v517 = vpop.permute.xlu0 %516
    %518 = vrot.lane.b32.xlu0 %v496, 112
    %v519 = vpop.permute.xlu0 %518
    %520 = vrot.lane.b32.xlu0 %v497, 112
    %v521 = vpop.permute.xlu0 %520
    %v530 = vadd.f32 %v328, %v507
    %v531 = vadd.f32 %v329, %v509
    %v532 = vadd.f32 %v330, %v511
    %v533 = vadd.f32 %v331, %v513
    %v534 = vadd.f32 %v332, %v515
    %v535 = vadd.f32 %v333, %v517
    %v536 = vadd.f32 %v334, %v519
    %v537 = vadd.f32 %v335, %v521
    %s539 = sor.u32 256, 8
    %540 = vbcast.lane.b32.xlu0 %v177, %s539
    %v541 = vpop.permute.xlu0 %540
    %s543 = sor.u32 256, 8
    %544 = vbcast.lane.b32.xlu0 %v184, %s543
    %v545 = vpop.permute.xlu0 %544
    %s547 = sor.u32 256, 8
    %548 = vbcast.lane.b32.xlu0 %v191, %s547
    %v549 = vpop.permute.xlu0 %548
    %s551 = sor.u32 256, 8
    %552 = vbcast.lane.b32.xlu0 %v198, %s551
    %v553 = vpop.permute.xlu0 %552
    %s555 = sor.u32 256, 8
    %556 = vbcast.lane.b32.xlu0 %v205, %s555
    %v557 = vpop.permute.xlu0 %556
    %s559 = sor.u32 256, 8
    %560 = vbcast.lane.b32.xlu0 %v212, %s559
    %v561 = vpop.permute.xlu0 %560
    %s563 = sor.u32 256, 8
    %564 = vbcast.lane.b32.xlu0 %v219, %s563
    %v565 = vpop.permute.xlu0 %564
    %s567 = sor.u32 256, 8
    %568 = vbcast.lane.b32.xlu0 %v226, %s567
    %v569 = vpop.permute.xlu0 %568
    %v570 = vmul.f32 %v541, %v283
    %v571 = vmul.f32 %v545, %v287
    %v572 = vmul.f32 %v549, %v291
    %v573 = vmul.f32 %v553, %v295
    %v574 = vmul.f32 %v557, %v299
    %v575 = vmul.f32 %v561, %v303
    %v576 = vmul.f32 %v565, %v307
    %v577 = vmul.f32 %v569, %v311
    %586 = vrot.lane.b32.xlu0 %v570, 120
    %v587 = vpop.permute.xlu0 %586
    %588 = vrot.lane.b32.xlu0 %v571, 120
    %v589 = vpop.permute.xlu0 %588
    %590 = vrot.lane.b32.xlu0 %v572, 120
    %v591 = vpop.permute.xlu0 %590
    %592 = vrot.lane.b32.xlu0 %v573, 120
    %v593 = vpop.permute.xlu0 %592
    %594 = vrot.lane.b32.xlu0 %v574, 120
    %v595 = vpop.permute.xlu0 %594
    %596 = vrot.lane.b32.xlu0 %v575, 120
    %v597 = vpop.permute.xlu0 %596
    %598 = vrot.lane.b32.xlu0 %v576, 120
    %v599 = vpop.permute.xlu0 %598
    %600 = vrot.lane.b32.xlu0 %v577, 120
    %v601 = vpop.permute.xlu0 %600
    %v610 = vadd.f32 %v530, %v587
    %v611 = vadd.f32 %v531, %v589
    %v612 = vadd.f32 %v532, %v591
    %v613 = vadd.f32 %v533, %v593
    %v614 = vadd.f32 %v534, %v595
    %v615 = vadd.f32 %v535, %v597
    %v616 = vadd.f32 %v536, %v599
    %v617 = vadd.f32 %v537, %v601
    %s619 = sor.u32 256, 24
    %620 = vbcast.lane.b32.xlu0 %v339, %s619
    %v621 = vpop.permute.xlu0 %620
    %s623 = sor.u32 256, 24
    %624 = vbcast.lane.b32.xlu0 %v347, %s623
    %v625 = vpop.permute.xlu0 %624
    %s627 = sor.u32 256, 24
    %628 = vbcast.lane.b32.xlu0 %v355, %s627
    %v629 = vpop.permute.xlu0 %628
    %s631 = sor.u32 256, 24
    %632 = vbcast.lane.b32.xlu0 %v363, %s631
    %v633 = vpop.permute.xlu0 %632
    %s635 = sor.u32 256, 24
    %636 = vbcast.lane.b32.xlu0 %v371, %s635
    %v637 = vpop.permute.xlu0 %636
    %s639 = sor.u32 256, 24
    %640 = vbcast.lane.b32.xlu0 %v379, %s639
    %v641 = vpop.permute.xlu0 %640
    %s643 = sor.u32 256, 24
    %644 = vbcast.lane.b32.xlu0 %v387, %s643
    %v645 = vpop.permute.xlu0 %644
    %s647 = sor.u32 256, 24
    %648 = vbcast.lane.b32.xlu0 %v395, %s647
    %v649 = vpop.permute.xlu0 %648
    %v650 = vmul.f32 %v621, %v453
    %v651 = vmul.f32 %v625, %v457
    %v652 = vmul.f32 %v629, %v461
    %v653 = vmul.f32 %v633, %v465
    %v654 = vmul.f32 %v637, %v469
    %v655 = vmul.f32 %v641, %v473
    %v656 = vmul.f32 %v645, %v477
    %v657 = vmul.f32 %v649, %v481
    %666 = vrot.lane.b32.xlu0 %v650, 104
    %v667 = vpop.permute.xlu0 %666
    %668 = vrot.lane.b32.xlu0 %v651, 104
    %v669 = vpop.permute.xlu0 %668
    %670 = vrot.lane.b32.xlu0 %v652, 104
    %v671 = vpop.permute.xlu0 %670
    %672 = vrot.lane.b32.xlu0 %v653, 104
    %v673 = vpop.permute.xlu0 %672
    %674 = vrot.lane.b32.xlu0 %v654, 104
    %v675 = vpop.permute.xlu0 %674
    %676 = vrot.lane.b32.xlu0 %v655, 104
    %v677 = vpop.permute.xlu0 %676
    %678 = vrot.lane.b32.xlu0 %v656, 104
    %v679 = vpop.permute.xlu0 %678
    %680 = vrot.lane.b32.xlu0 %v657, 104
    %v681 = vpop.permute.xlu0 %680
    %v690 = vadd.f32 %v610, %v667
    %v691 = vadd.f32 %v611, %v669
    %v692 = vadd.f32 %v612, %v671
    %v693 = vadd.f32 %v613, %v673
    %v694 = vadd.f32 %v614, %v675
    %v695 = vadd.f32 %v615, %v677
    %v696 = vadd.f32 %v616, %v679
    %v697 = vadd.f32 %v617, %v681
    %699 = vrot.lane.b32.xlu0 %v134, 32
    %v700 = vpop.permute.xlu0 %699
    %v702 = vadd.f32 %v690, %v700
    %v703 = vadd.f32 %v691, %v700
    %v704 = vadd.f32 %v692, %v700
    %v705 = vadd.f32 %v693, %v700
    %v706 = vadd.f32 %v694, %v700
    %v707 = vadd.f32 %v695, %v700
    %v708 = vadd.f32 %v696, %v700
    %v709 = vadd.f32 %v697, %v700
    %vm710 = vcmask 326912
    %v711 = vsel %vm710, %v702, -inf
    %712 = vmax.xlane.f32.xlu0 %v711
    %v713 = vpop.xlane.xlu0 %712
    %v714 = vsel %vm710, %v703, -inf
    %715 = vmax.xlane.f32.xlu0 %v714
    %v716 = vpop.xlane.xlu0 %715
    %v717 = vsel %vm710, %v704, -inf
    %718 = vmax.xlane.f32.xlu0 %v717
    %v719 = vpop.xlane.xlu0 %718
    %v720 = vsel %vm710, %v705, -inf
    %721 = vmax.xlane.f32.xlu0 %v720
    %v722 = vpop.xlane.xlu0 %721
    %v723 = vsel %vm710, %v706, -inf
    %724 = vmax.xlane.f32.xlu0 %v723
    %v725 = vpop.xlane.xlu0 %724
    %v726 = vsel %vm710, %v707, -inf
    %727 = vmax.xlane.f32.xlu0 %v726
    %v728 = vpop.xlane.xlu0 %727
    %v729 = vsel %vm710, %v708, -inf
    %730 = vmax.xlane.f32.xlu0 %v729
    %v731 = vpop.xlane.xlu0 %730
    %v732 = vsel %vm710, %v709, -inf
    %733 = vmax.xlane.f32.xlu0 %v732
    %v734 = vpop.xlane.xlu0 %733
    %v735 = vsub.f32 %v702, %v713
    %v736 = vsub.f32 %v703, %v716
    %v737 = vsub.f32 %v704, %v719
    %v738 = vsub.f32 %v705, %v722
    %v739 = vsub.f32 %v706, %v725
    %v740 = vsub.f32 %v707, %v728
    %v741 = vsub.f32 %v708, %v731
    %v742 = vsub.f32 %v709, %v734
    %v743 = vmul.f32 %v735, 1.442695
    %v744 = vpow.pop %v743
    %v745 = vmul.f32 %v736, 1.442695
    %v746 = vpow.pop %v745
    %v747 = vmul.f32 %v737, 1.442695
    %v748 = vpow.pop %v747
    %v749 = vmul.f32 %v738, 1.442695
    %v750 = vpow.pop %v749
    %v751 = vmul.f32 %v739, 1.442695
    %v752 = vpow.pop %v751
    %v753 = vmul.f32 %v740, 1.442695
    %v754 = vpow.pop %v753
    %v755 = vmul.f32 %v741, 1.442695
    %v756 = vpow.pop %v755
    %v757 = vmul.f32 %v742, 1.442695
    %v758 = vpow.pop %v757
    %767 = vrot.lane.b32.xlu0 %v744, 96
    %v768 = vpop.permute.xlu0 %767
    %769 = vrot.lane.b32.xlu0 %v746, 96
    %v770 = vpop.permute.xlu0 %769
    %771 = vrot.lane.b32.xlu0 %v748, 96
    %v772 = vpop.permute.xlu0 %771
    %773 = vrot.lane.b32.xlu0 %v750, 96
    %v774 = vpop.permute.xlu0 %773
    %775 = vrot.lane.b32.xlu0 %v752, 96
    %v776 = vpop.permute.xlu0 %775
    %777 = vrot.lane.b32.xlu0 %v754, 96
    %v778 = vpop.permute.xlu0 %777
    %779 = vrot.lane.b32.xlu0 %v756, 96
    %v780 = vpop.permute.xlu0 %779
    %781 = vrot.lane.b32.xlu0 %v758, 96
    %v782 = vpop.permute.xlu0 %781
    %vm791 = vcmask 64512
    %v792 = vsel %vm791, %v768, 0.0
    %793 = vadd.xlane.f32.xlu0 %v792
    %v794 = vpop.xlane.xlu0 %793
    %v795 = vsel %vm791, %v770, 0.0
    %796 = vadd.xlane.f32.xlu0 %v795
    %v797 = vpop.xlane.xlu0 %796
    %v798 = vsel %vm791, %v772, 0.0
    %799 = vadd.xlane.f32.xlu0 %v798
    %v800 = vpop.xlane.xlu0 %799
    %v801 = vsel %vm791, %v774, 0.0
    %802 = vadd.xlane.f32.xlu0 %v801
    %v803 = vpop.xlane.xlu0 %802
    %v804 = vsel %vm791, %v776, 0.0
    %805 = vadd.xlane.f32.xlu0 %v804
    %v806 = vpop.xlane.xlu0 %805
    %v807 = vsel %vm791, %v778, 0.0
    %808 = vadd.xlane.f32.xlu0 %v807
    %v809 = vpop.xlane.xlu0 %808
    %v810 = vsel %vm791, %v780, 0.0
    %811 = vadd.xlane.f32.xlu0 %v810
    %v812 = vpop.xlane.xlu0 %811
    %v813 = vsel %vm791, %v782, 0.0
    %814 = vadd.xlane.f32.xlu0 %v813
    %v815 = vpop.xlane.xlu0 %814
    %v816 = vrcp.pop %v794
    %v817 = vrcp.pop %v797
    %v818 = vrcp.pop %v800
    %v819 = vrcp.pop %v803
    %v820 = vrcp.pop %v806
    %v821 = vrcp.pop %v809
    %v822 = vrcp.pop %v812
    %v823 = vrcp.pop %v815
    %v824 = vmul.f32 %v744, %v816
    %v825 = vmul.f32 %v746, %v817
    %v826 = vmul.f32 %v748, %v818
    %v827 = vmul.f32 %v750, %v819
    %v828 = vmul.f32 %v752, %v820
    %v829 = vmul.f32 %v754, %v821
    %v830 = vmul.f32 %v756, %v822
    %v831 = vmul.f32 %v758, %v823
    %v832 = vlaneseq
    %v833 = vshrl.u32 %v832, 7
    %v834 = vsub.s32 0, %v833
    %v835 = vrot.slane %v135, %v834
    %844 = vrot.lane.b32.xlu0 %v824, 96
    %v845 = vpop.permute.xlu0 %844
    %846 = vrot.lane.b32.xlu0 %v825, 96
    %v847 = vpop.permute.xlu0 %846
    %848 = vrot.lane.b32.xlu0 %v826, 96
    %v849 = vpop.permute.xlu0 %848
    %850 = vrot.lane.b32.xlu0 %v827, 96
    %v851 = vpop.permute.xlu0 %850
    %852 = vrot.lane.b32.xlu0 %v828, 96
    %v853 = vpop.permute.xlu0 %852
    %854 = vrot.lane.b32.xlu0 %v829, 96
    %v855 = vpop.permute.xlu0 %854
    %856 = vrot.lane.b32.xlu0 %v830, 96
    %v857 = vpop.permute.xlu0 %856
    %858 = vrot.lane.b32.xlu0 %v831, 96
    %v859 = vpop.permute.xlu0 %858
    %861 = vrot.lane.b32.xlu0 %v130, 64
    %v862 = vpop.permute.xlu0 %861
    %v864 = vsel %vm791, %v845, 0
    %v866 = vsel %vm791, %v847, 0
    %v868 = vsel %vm791, %v849, 0
    %v870 = vsel %vm791, %v851, 0
    %v872 = vsel %vm791, %v853, 0
    %v874 = vsel %vm791, %v855, 0
    %v876 = vsel %vm791, %v857, 0
    %v878 = vsel %vm791, %v859, 0
    %880 = vmatprep.subr.mxu0 0.0
    %881 = vmatpush1.msra.mxu0 %v862
    %882 = vmatprep.subr.mxu0 0.0
    %883 = vmatpush1.msra.mxu0 0.0
    %884 = vmatprep.subr.mxu0 0.0
    %885 = vmatpush1.msra.mxu0 0.0
    %886 = vmatprep.subr.mxu0 0.0
    %887 = vmatpush1.msra.mxu0 0.0
    %888 = vmatprep.subr.mxu0 0.0
    %889 = vmatpush1.msra.mxu0 0.0
    %890 = vmatprep.subr.mxu0 0.0
    %891 = vmatpush1.msra.mxu0 0.0
    %892 = vmatprep.subr.mxu0 0.0
    %893 = vmatpush1.msra.mxu0 0.0
    %894 = vmatprep.subr.mxu0 0.0
    %895 = vmatpush1.msra.mxu0 0.0
    %896 = vmatprep.subr.mxu0 0.0
    %897 = vmatpush1.msra.mxu0 0.0
    %898 = vmatprep.subr.mxu0 0.0
    %899 = vmatpush1.msra.mxu0 0.0
    %900 = vmatprep.subr.mxu0 0.0
    %901 = vmatpush1.msra.mxu0 0.0
    %902 = vmatprep.subr.mxu0 0.0
    %903 = vmatpush1.msra.mxu0 0.0
    %904 = vmatprep.subr.mxu0 0.0
    %905 = vmatpush1.msra.mxu0 0.0
    %906 = vmatprep.subr.mxu0 0.0
    %907 = vmatpush1.msra.mxu0 0.0
    %908 = vmatprep.subr.mxu0 0.0
    %909 = vmatpush1.msra.mxu0 0.0
    %910 = vmatprep.subr.mxu0 0.0
    %911 = vmatpush1.msra.mxu0 0.0
    %912 = vmatprep.subr.mxu0 0.0
    %913 = vmatpush1.msra.mxu0 0.0
    %914 = vmatprep.subr.mxu0 0.0
    %915 = vmatpush1.msra.mxu0 0.0
    %916 = vmatprep.subr.mxu0 0.0
    %917 = vmatpush1.msra.mxu0 0.0
    %918 = vmatprep.subr.mxu0 0.0
    %919 = vmatpush1.msra.mxu0 0.0
    %920 = vmatprep.subr.mxu0 0.0
    %921 = vmatpush1.msra.mxu0 0.0
    %922 = vmatprep.subr.mxu0 0.0
    %923 = vmatpush1.msra.mxu0 0.0
    %924 = vmatprep.subr.mxu0 0.0
    %925 = vmatpush1.msra.mxu0 0.0
    %926 = vmatprep.subr.mxu0 0.0
    %927 = vmatpush1.msra.mxu0 0.0
    %928 = vmatprep.subr.mxu0 0.0
    %929 = vmatpush1.msra.mxu0 0.0
    %930 = vmatprep.subr.mxu0 0.0
    %931 = vmatpush1.msra.mxu0 0.0
    %932 = vmatprep.subr.mxu0 0.0
    %933 = vmatpush1.msra.mxu0 0.0
    %934 = vmatprep.subr.mxu0 0.0
    %935 = vmatpush1.msra.mxu0 0.0
    %936 = vmatprep.subr.mxu0 0.0
    %937 = vmatpush1.msra.mxu0 0.0
    %938 = vmatprep.subr.mxu0 0.0
    %939 = vmatpush1.msra.mxu0 0.0
    %940 = vmatprep.subr.mxu0 0.0
    %941 = vmatpush1.msra.mxu0 0.0
    %942 = vmatprep.subr.mxu0 0.0
    %943 = vmatpush1.msra.mxu0 0.0
    %944 = vmatprep.mubr.f32.mxu0 0.0
    %945 = vmatmul.mubr.f32.gmra.mrb[0].mxu0 %v864
    %v946 = vpop.f32.mrb[0].mxu0
    %v947 = vadd.f32 %v835, %v946
    %v948 = vpop.f32.mrb[0].mxu0
    %949 = vmatprep.mubr.f32.mxu0 0.0
    %950 = vmatmul.mubr.f32.gmra.mrb[0].mxu0 %v866
    %v951 = vpop.f32.mrb[0].mxu0
    %v952 = vadd.f32 %v835, %v951
    %v953 = vpop.f32.mrb[0].mxu0
    %954 = vmatprep.mubr.f32.mxu0 0.0
    %955 = vmatmul.mubr.f32.gmra.mrb[0].mxu0 %v868
    %v956 = vpop.f32.mrb[0].mxu0
    %v957 = vadd.f32 %v835, %v956
    %v958 = vpop.f32.mrb[0].mxu0
    %959 = vmatprep.mubr.f32.mxu0 0.0
    %960 = vmatmul.mubr.f32.gmra.mrb[0].mxu0 %v870
    %v961 = vpop.f32.mrb[0].mxu0
    %v962 = vadd.f32 %v835, %v961
    %v963 = vpop.f32.mrb[0].mxu0
    %964 = vmatprep.mubr.f32.mxu0 0.0
    %965 = vmatmul.mubr.f32.gmra.mrb[0].mxu0 %v872
    %v966 = vpop.f32.mrb[0].mxu0
    %v967 = vadd.f32 %v835, %v966
    %v968 = vpop.f32.mrb[0].mxu0
    %969 = vmatprep.mubr.f32.mxu0 0.0
    %970 = vmatmul.mubr.f32.gmra.mrb[0].mxu0 %v874
    %v971 = vpop.f32.mrb[0].mxu0
    %v972 = vadd.f32 %v835, %v971
    %v973 = vpop.f32.mrb[0].mxu0
    %974 = vmatprep.mubr.f32.mxu0 0.0
    %975 = vmatmul.mubr.f32.gmra.mrb[0].mxu0 %v876
    %v976 = vpop.f32.mrb[0].mxu0
    %v977 = vadd.f32 %v835, %v976
    %v978 = vpop.f32.mrb[0].mxu0
    %979 = vmatprep.mubr.f32.mxu0 0.0
    %980 = vmatmul.mubr.f32.gmra.mrb[0].mxu0 %v878
    %v981 = vpop.f32.mrb[0].mxu0
    %v982 = vadd.f32 %v835, %v981
    %v983 = vpop.f32.mrb[0].mxu0
    %984 = vdwg.mxu0
    %985 = vst.msk [vmem:[#allocation8] sm:$0xff] %vm59, %v947
    %986 = vst.msk [vmem:[#allocation8 + $0x8] sm:$0xff] %vm59, %v952
    %987 = vst.msk [vmem:[#allocation8 + $0x10] sm:$0xff] %vm59, %v957
    %988 = vst.msk [vmem:[#allocation8 + $0x18] sm:$0xff] %vm59, %v962
    %989 = vst.msk [vmem:[#allocation8 + $0x20] sm:$0xff] %vm59, %v967
    %990 = vst.msk [vmem:[#allocation8 + $0x28] sm:$0xff] %vm59, %v972
    %991 = vst.msk [vmem:[#allocation8 + $0x30] sm:$0xff] %vm59, %v977
    %992 = vst.msk [vmem:[#allocation8 + $0x38] sm:$0xff] %vm59, %v982
    // Predicated region
    $region26: #{multi_head_attention.1} parent=1 // pred_check
      _
    $region27: #{multi_head_attention.1} parent=1 // pred_check_branch
      %994 = sbr.rel (0) target = $region29
    $region28: #{multi_head_attention.1} parent=1 // pred_region
      %s996 = ssub.s32 1024, 1024
      %997 = vsyncadd [#allocation4], %s996
      %s998 = sshll.u32 [#allocation8], 4
      %s999 = int_to_ptr.vmem [resolvable:$true] %s998
      %1004 = dma.vmem_to_hbm [thread:$0]  %s999, 1024, %s3, [#allocation4], 128, 128, 8
    $region29: #{multi_head_attention.1} parent=1 // pred_fallthru
      _
    // Predicated region
    $region30: #{multi_head_attention.1} parent=1 // pred_check
      _
    $region31: #{multi_head_attention.1} parent=1 // pred_check_branch
      %1006 = sbr.rel (0) target = $region33
    $region32: #{multi_head_attention.1} parent=1 // pred_region
      %1007 = dma.done [#allocation4], 1024
    $region33: #{multi_head_attention.1} parent=1 // pred_fallthru
      _
    %1008 = vsyncpa [#allocation3], 1
    %1009 = vsyncpa [#allocation6], 1
    %1010 = vsyncpa [#allocation4], 1

</llo_original>
